<compile_context>
chip_gen: v7x
topology: tpu7x:2x2x1
jax: 0.10.0
libtpu: 0.0.40
codegen_flags: <defaults>
</compile_context>

<pallas_src>
import jax
import jax.numpy as jnp
from jax.experimental import pallas as pl
from jax.experimental.pallas import tpu as pltpu

_MiB = 1 << 20


def _round_up(a: int, b: int) -> int:
    return ((a + b - 1) // b) * b


def _tpu_config():
    """Returns (vmem_bytes, mxu_m, num_tensorcores) for the local chip."""
    kind = ""
    try:
        kind = jax.devices()[0].device_kind.lower()
    except Exception:
        pass
    gen = 0
    for g in (7, 6, 5):
        if f"v{g}" in kind or f"tpu{g}" in kind:
            gen = g
            break
    vmem = None
    try:
        info = pltpu.get_tpu_info()
        vmem = int(getattr(info, "vmem_capacity_bytes", 0)) or None
    except Exception:
        vmem = None
    if gen == 5:
        return (vmem or 128 * _MiB), 128, 1
    if gen == 6:
        return (vmem or 128 * _MiB), 256, 1
    if gen == 7:
        return (vmem or 64 * _MiB), 256, 2
    # Unknown chip: conservative VMEM, wide MXU, single core.
    return (vmem or 64 * _MiB), 256, 1


def _pick_tile(N, Fp, bytes_for_rows, mxu_m, num_tc, tm_req):
    """Pick the batch tile tm (rows) for an (N, Fp) problem."""
    # Per padded row of VMEM: x + out double-buffered f32 (16*Fp) plus ~8*Fp of
    # in-kernel f32 temporaries (h / y).
    per_row = 24 * Fp
    tm = max(16, min(tm_req, bytes_for_rows // per_row, _round_up(N, 16)))

    # v7x megacore: split the "parallel" batch axis across both TensorCores only
    # when each half still gets at least one full MXU-M tile.  On 1-TC chips
    # (v5e/v6e) never force extra grid steps.
    if num_tc >= 2 and _round_up(N, 16) >= 2 * mxu_m:
        tm = min(tm, _round_up(-(-N // num_tc), mxu_m))

    # Granularity: multiples of 16 (bf16 sublane packing); prefer MXU-M
    # multiples only if that does not inflate padding / grid steps.
    candidates = [max(16, (tm // 16) * 16)]
    if tm >= mxu_m:
        candidates.append((tm // mxu_m) * mxu_m)

    def cost(t):
        n_pad = _round_up(N, t)
        return (n_pad, n_pad // t)

    return min(candidates, key=cost)


def residual_block_kernel(x_ref, w1_ref, w2_ref, shift_ref, o_ref):
    # Layer 1: Linear with BN scale folded into columns -> +shift -> ReLU.
    h = jnp.dot(x_ref[...].astype(jnp.bfloat16), w1_ref[...],
                preferred_element_type=jnp.float32)
    h = jnp.maximum(h + shift_ref[0:1, :], 0.0)

    # Layer 2: same structure.
    y = jnp.dot(h.astype(jnp.bfloat16), w2_ref[...],
                preferred_element_type=jnp.float32)
    y = jnp.maximum(y + shift_ref[1:2, :], 0.0)

    # Residual add: re-read x from VMEM (cheap vld) rather than holding the
    # full f32 tile live in vregs across both matmuls.
    o_ref[...] = (x_ref[...] + y).astype(o_ref.dtype)


def residual_block(x, params, *, tm_req=2048, alias_input=False):
    """x: (N, F) float32.  params: dict from pack_params()."""
    N, Fi = x.shape
    w1, w2, shift = params["w1"], params["w2"], params["shift"]
    Fp = w1.shape[0]
    assert Fi == params["features"], "x feature dim does not match packed params"

    vmem_bytes, mxu_m, num_tc = _tpu_config()
    budget = int(0.75 * vmem_bytes)
    weight_bytes = 2 * Fp * Fp * 2  # two bf16 (Fp, Fp) blocks, single-buffered
    if weight_bytes > budget:
        # TODO(synk): K-tile the weights (extra "arbitrary" grid axis + f32
        # accumulator scratch) instead of failing for very large F.
        raise NotImplementedError(
            f"F={Fi} (padded {Fp}) needs K-tiled weights; not implemented")

    tm = _pick_tile(N, Fp, budget - weight_bytes, mxu_m, num_tc, tm_req)
    n_pad = _round_up(N, tm)
    x_pad = x
    if n_pad != N or Fp != Fi:
        x_pad = jnp.pad(x, ((0, n_pad - N), (0, Fp - Fi)))
    grid = (n_pad // tm,)

    # Explicit VMEM limit (sized generously: weights counted double-buffered,
    # x/out double-buffered, + f32 temporaries + headroom), capped at physical.
    vmem_needed = (2 * weight_bytes          # weights (worst case double-buf)
                   + 2 * 2 * Fp * 4          # stacked shifts
                   + 2 * 2 * tm * Fp * 4     # x + out tiles, double-buffered
                   + 2 * tm * Fp * 4)        # in-kernel h / y f32
    vmem_limit = int(min(vmem_bytes, max(32 * _MiB, vmem_needed + 4 * _MiB)))

    flops = 2 * 2 * n_pad * Fp * Fp + 4 * n_pad * Fp
    bytes_accessed = (2 * n_pad * Fp * 4     # x in + out (f32)
                      + 2 * Fp * Fp * 2      # two bf16 weight matrices
                      + 2 * Fp * 4)          # stacked shifts (f32)

    alias = {0: 0} if alias_input else {}

    def build(single_buffer_weights):
        def resident_spec(shape):
            # Constant index_map -> the block never changes across the grid;
            # single-buffering it halves its VMEM footprint.
            if single_buffer_weights:
                return pl.BlockSpec(shape, lambda i: (0, 0),
                                    pipeline_mode=pl.Buffered(1))
            return pl.BlockSpec(shape, lambda i: (0, 0))

        return pl.pallas_call(
            residual_block_kernel,
            out_shape=jax.ShapeDtypeStruct((n_pad, Fp), x.dtype),
            grid_spec=pltpu.PrefetchScalarGridSpec(
                num_scalar_prefetch=0,
                grid=grid,
                in_specs=[
                    pl.BlockSpec((tm, Fp), lambda i: (i, 0)),   # x tile
                    resident_spec((Fp, Fp)),                    # W1 (folded bf16)
                    resident_spec((Fp, Fp)),                    # W2 (folded bf16)
                    resident_spec((2, Fp)),                     # stacked shifts
                ],
                out_specs=pl.BlockSpec((tm, Fp), lambda i: (i, 0)),
            ),
            compiler_params=pltpu.CompilerParams(
                dimension_semantics=("parallel",),
                vmem_limit_bytes=vmem_limit),
            cost_estimate=pl.CostEstimate(
                flops=flops, transcendentals=0, bytes_accessed=bytes_accessed),
            input_output_aliases=alias,
        )

    try:
        out = build(True)(x_pad, w1, w2, shift)
    except Exception:
        # pl.Buffered(1) not supported on this jax/libtpu build: fall back to
        # default double-buffering (correctness identical, more VMEM).
        out = build(False)(x_pad, w1, w2, shift)

    if n_pad != N or Fp != Fi:
        out = out[:N, :Fi]
    return out


def init_params(key, in_features):
    """Raw parameters mirroring PyTorch defaults (Linear: U(-1/sqrt(F), 1/sqrt(F));
    BatchNorm1d: gamma=1, beta=0, running_mean=0, running_var=1, eps=1e-5)."""
    F_ = in_features
    ks = jax.random.split(key, 4)
    bound = 1.0 / jnp.sqrt(F_)

    w1 = jax.random.uniform(ks[0], (F_, F_), jnp.float32, -bound, bound)  # (out, in)
    b1 = jax.random.uniform(ks[1], (F_,), jnp.float32, -bound, bound)
    w2 = jax.random.uniform(ks[2], (F_, F_), jnp.float32, -bound, bound)
    b2 = jax.random.uniform(ks[3], (F_,), jnp.float32, -bound, bound)

    ones = jnp.ones((F_,), jnp.float32)
    zeros = jnp.zeros((F_,), jnp.float32)
    return {
        "w1": w1, "b1": b1, "gamma1": ones, "beta1": zeros,
        "rmean1": zeros, "rvar1": ones,
        "w2": w2, "b2": b2, "gamma2": ones, "beta2": zeros,
        "rmean2": zeros, "rvar2": ones,
        "eps": 1e-5,
    }


def pack_params(raw, lane=128):
    """Fold eval-mode BatchNorm + Linear bias into (bf16 weight, f32 shift),
    padding the feature dim to a multiple of `lane` so output stores are
    lane-dense.  The fold is computed in f32; only the final folded weight is
    cast to bf16.

    BN(Linear(x)) = (x @ W.T + b) * scale + shift_bn
                  = x @ (W.T * scale) + (b * scale + shift_bn)
    """
    eps = raw["eps"]
    Fi = raw["w1"].shape[0]
    Fp = _round_up(Fi, lane)

    def fold(w, b, gamma, beta, rmean, rvar):
        scale = gamma / jnp.sqrt(rvar + eps)                 # (F,) f32
        w_folded = w.T * scale[None, :]                      # (F_in, F_out) f32
        shift = b * scale + (beta - rmean * scale)           # (F,) f32
        w_folded = jnp.pad(w_folded, ((0, Fp - Fi), (0, Fp - Fi)))
        shift = jnp.pad(shift, (0, Fp - Fi))
        return w_folded.astype(jnp.bfloat16), shift

    w1, s1 = fold(raw["w1"], raw["b1"], raw["gamma1"], raw["beta1"],
                  raw["rmean1"], raw["rvar1"])
    w2, s2 = fold(raw["w2"], raw["b2"], raw["gamma2"], raw["beta2"],
                  raw["rmean2"], raw["rvar2"])
    return {"w1": w1, "w2": w2, "shift": jnp.stack([s1, s2], axis=0),
            "features": Fi}


def residual_block_ref(x, packed):
    """Pure-JAX reference with the same bf16-matmul / f32-accumulate numerics."""
    Fi = packed["features"]
    Fp = packed["w1"].shape[0]
    xp = jnp.pad(x, ((0, 0), (0, Fp - Fi)))
    h = jnp.maximum(
        jnp.dot(xp.astype(jnp.bfloat16), packed["w1"],
                preferred_element_type=jnp.float32) + packed["shift"][0], 0.0)
    y = jnp.maximum(
        jnp.dot(h.astype(jnp.bfloat16), packed["w2"],
                preferred_element_type=jnp.float32) + packed["shift"][1], 0.0)
    return (xp + y)[:, :Fi]


def residual_block_f32_ref(x, raw):
    """Full-precision reference of the eval-mode PyTorch module."""
    eps = raw["eps"]

    def layer(v, w, b, g, beta, rm, rv):
        lin = v @ w.T + b
        bn = (lin - rm) / jnp.sqrt(rv + eps) * g + beta
        return jnp.maximum(bn, 0.0)

    h = layer(x, raw["w1"], raw["b1"], raw["gamma1"], raw["beta1"],
              raw["rmean1"], raw["rvar1"])
    y = layer(h, raw["w2"], raw["b2"], raw["gamma2"], raw["beta2"],
              raw["rmean2"], raw["rvar2"])
    return x + y


if __name__ == "__main__":
    # TODO(synk): Dropout(p=0.1) is identity in eval mode and BatchNorm uses
    # running stats; training-mode dropout masks / batch statistics are not
    # implemented here.
    N, F_in = 20, 96   # exercises both batch padding (20 -> 32) and lane padding (96 -> 128)
    key = jax.random.PRNGKey(0)
    kx, kp = jax.random.split(key)
    x = jax.random.normal(kx, (N, F_in), jnp.float32)

    raw = init_params(kp, F_in)
    packed = pack_params(raw)

    out = jax.block_until_ready(residual_block(x, packed))
    assert out.shape == (N, F_in)

    ref_bf16 = residual_block_ref(x, packed)          # same bf16 numerics
    ref_f32 = residual_block_f32_ref(x, raw)          # pure f32 module semantics
    assert jnp.allclose(out, ref_bf16, atol=2e-3, rtol=2e-3), "mismatch vs bf16 reference"
    assert jnp.allclose(out, ref_f32, atol=2e-2, rtol=2e-2), "mismatch vs f32 reference"
    print("KERNEL_OK")
</pallas_src>

<mosaic_0001>
module attributes {stable_mosaic.version = 11 : i64} {
  func.func @residual_block_kernel(%arg0: i32, %arg1: memref<32x128xf32, #tpu.memory_space<vmem>>, %arg2: memref<128x128xbf16, #tpu.memory_space<vmem>>, %arg3: memref<128x128xbf16, #tpu.memory_space<vmem>>, %arg4: memref<2x128xf32, #tpu.memory_space<vmem>>, %arg5: memref<32x128xf32, #tpu.memory_space<vmem>>) attributes {dimension_semantics = [#tpu.dimension_semantics<parallel>], iteration_bounds = array<i64: 1>, scalar_prefetch = 0 : i64, scratch_operands = 0 : i64, tpu.core_type = #tpu.core_type<tc>, window_params = [{transform_indices = @transform_0, window_bounds = array<i64: 32, 128>}, {pipeline_mode = #tpu.pipeline_mode<synchronous>, transform_indices = @transform_1, window_bounds = array<i64: 128, 128>}, {pipeline_mode = #tpu.pipeline_mode<synchronous>, transform_indices = @transform_2, window_bounds = array<i64: 128, 128>}, {pipeline_mode = #tpu.pipeline_mode<synchronous>, transform_indices = @transform_3, window_bounds = array<i64: 2, 128>}, {transform_indices = @transform_4, window_bounds = array<i64: 32, 128>}]} {
    %c0 = arith.constant 0 : index
    %c0_0 = arith.constant 0 : index
    %0 = vector.load %arg1[%c0, %c0_0] : memref<32x128xf32, #tpu.memory_space<vmem>>, vector<32x128xf32>
    %1 = arith.truncf %0 : vector<32x128xf32> to vector<32x128xbf16>
    %c0_1 = arith.constant 0 : index
    %c0_2 = arith.constant 0 : index
    %2 = vector.load %arg2[%c0_1, %c0_2] : memref<128x128xbf16, #tpu.memory_space<vmem>>, vector<128x128xbf16>
    %cst = arith.constant dense<0.000000e+00> : vector<32x128xf32>
    %3 = tpu.matmul %1, %2, %cst {dimension_numbers = #tpu.dot_dimension_numbers<[1], [0], [0], [1], [0, 0, 1, 1], [], []>} : vector<32x128xbf16>, vector<128x128xbf16>, vector<32x128xf32> -> vector<32x128xf32>
    %c0_3 = arith.constant 0 : index
    %c0_4 = arith.constant 0 : index
    %4 = vector.load %arg4[%c0_3, %c0_4] : memref<2x128xf32, #tpu.memory_space<vmem>>, vector<1x128xf32>
    %5 = vector.broadcast %4 : vector<1x128xf32> to vector<32x128xf32>
    %6 = arith.addf %3, %5 : vector<32x128xf32>
    %cst_5 = arith.constant 0.000000e+00 : f32
    %7 = vector.broadcast %cst_5 : f32 to vector<32x128xf32>
    %8 = arith.maximumf %6, %7 : vector<32x128xf32>
    %9 = arith.truncf %8 : vector<32x128xf32> to vector<32x128xbf16>
    %c0_6 = arith.constant 0 : index
    %c0_7 = arith.constant 0 : index
    %10 = vector.load %arg3[%c0_6, %c0_7] : memref<128x128xbf16, #tpu.memory_space<vmem>>, vector<128x128xbf16>
    %cst_8 = arith.constant dense<0.000000e+00> : vector<32x128xf32>
    %11 = tpu.matmul %9, %10, %cst_8 {dimension_numbers = #tpu.dot_dimension_numbers<[1], [0], [0], [1], [0, 0, 1, 1], [], []>} : vector<32x128xbf16>, vector<128x128xbf16>, vector<32x128xf32> -> vector<32x128xf32>
    %c1 = arith.constant 1 : index
    %c0_9 = arith.constant 0 : index
    %12 = vector.load %arg4[%c1, %c0_9] : memref<2x128xf32, #tpu.memory_space<vmem>>, vector<1x128xf32>
    %13 = vector.broadcast %12 : vector<1x128xf32> to vector<32x128xf32>
    %14 = arith.addf %11, %13 : vector<32x128xf32>
    %cst_10 = arith.constant 0.000000e+00 : f32
    %15 = vector.broadcast %cst_10 : f32 to vector<32x128xf32>
    %16 = arith.maximumf %14, %15 : vector<32x128xf32>
    %c0_11 = arith.constant 0 : index
    %c0_12 = arith.constant 0 : index
    %17 = vector.load %arg1[%c0_11, %c0_12] : memref<32x128xf32, #tpu.memory_space<vmem>>, vector<32x128xf32>
    %18 = arith.addf %17, %16 : vector<32x128xf32>
    %c0_13 = arith.constant 0 : index
    %c0_14 = arith.constant 0 : index
    %19 = vector.load %arg5[%c0_13, %c0_14] : memref<32x128xf32, #tpu.memory_space<vmem>>, vector<32x128xf32>
    tpu.vector_store %arg5[%c0_13, %c0_14], %18 {strides = array<i32>} : memref<32x128xf32, #tpu.memory_space<vmem>>, vector<32x128xf32>,
    return
  }
  func.func @transform_0(%arg0: i32) -> (i32, i32) {
    %c0_i32 = arith.constant 0 : i32
    %c0_i32_0 = arith.constant 0 : i32
    return %arg0, %c0_i32 : i32, i32
  }
  func.func @transform_1(%arg0: i32) -> (i32, i32) {
    %c0_i32 = arith.constant 0 : i32
    %c0_i32_0 = arith.constant 0 : i32
    %c0_i32_1 = arith.constant 0 : i32
    return %c0_i32, %c0_i32_0 : i32, i32
  }
  func.func @transform_2(%arg0: i32) -> (i32, i32) {
    %c0_i32 = arith.constant 0 : i32
    %c0_i32_0 = arith.constant 0 : i32
    %c0_i32_1 = arith.constant 0 : i32
    return %c0_i32, %c0_i32_0 : i32, i32
  }
  func.func @transform_3(%arg0: i32) -> (i32, i32) {
    %c0_i32 = arith.constant 0 : i32
    %c0_i32_0 = arith.constant 0 : i32
    %c0_i32_1 = arith.constant 0 : i32
    return %c0_i32, %c0_i32_0 : i32, i32
  }
  func.func @transform_4(%arg0: i32) -> (i32, i32) {
    %c0_i32 = arith.constant 0 : i32
    %c0_i32_0 = arith.constant 0 : i32
    return %arg0, %c0_i32 : i32, i32
  }
}

module attributes {stable_mosaic.version = 11 : i64} {
  func.func @residual_block_kernel(%arg0: i32, %arg1: memref<32x128xf32, #tpu.memory_space<vmem>>, %arg2: memref<128x128xbf16, #tpu.memory_space<vmem>>, %arg3: memref<128x128xbf16, #tpu.memory_space<vmem>>, %arg4: memref<2x128xf32, #tpu.memory_space<vmem>>, %arg5: memref<32x128xf32, #tpu.memory_space<vmem>>) attributes {dimension_semantics = [#tpu.dimension_semantics<parallel>], iteration_bounds = array<i64: 1>, scalar_prefetch = 0 : i64, scratch_operands = 0 : i64, tpu.core_type = #tpu.core_type<tc>, window_params = [{transform_indices = @transform_0, window_bounds = array<i64: 32, 128>}, {pipeline_mode = #tpu.pipeline_mode<synchronous>, transform_indices = @transform_1, window_bounds = array<i64: 128, 128>}, {pipeline_mode = #tpu.pipeline_mode<synchronous>, transform_indices = @transform_2, window_bounds = array<i64: 128, 128>}, {pipeline_mode = #tpu.pipeline_mode<synchronous>, transform_indices = @transform_3, window_bounds = array<i64: 2, 128>}, {transform_indices = @transform_4, window_bounds = array<i64: 32, 128>}]} {
    %c0 = arith.constant 0 : index
    %c0_0 = arith.constant 0 : index
    %0 = vector.load %arg1[%c0, %c0_0] : memref<32x128xf32, #tpu.memory_space<vmem>>, vector<32x128xf32>
    %1 = arith.truncf %0 : vector<32x128xf32> to vector<32x128xbf16>
    %c0_1 = arith.constant 0 : index
    %c0_2 = arith.constant 0 : index
    %2 = vector.load %arg2[%c0_1, %c0_2] : memref<128x128xbf16, #tpu.memory_space<vmem>>, vector<128x128xbf16>
    %cst = arith.constant dense<0.000000e+00> : vector<32x128xf32>
    %3 = tpu.matmul %1, %2, %cst {dimension_numbers = #tpu.dot_dimension_numbers<[1], [0], [0], [1], [0, 0, 1, 1], [], []>} : vector<32x128xbf16>, vector<128x128xbf16>, vector<32x128xf32> -> vector<32x128xf32>
    %c0_3 = arith.constant 0 : index
    %c0_4 = arith.constant 0 : index
    %4 = vector.load %arg4[%c0_3, %c0_4] : memref<2x128xf32, #tpu.memory_space<vmem>>, vector<1x128xf32>
    %5 = vector.broadcast %4 : vector<1x128xf32> to vector<32x128xf32>
    %6 = arith.addf %3, %5 : vector<32x128xf32>
    %cst_5 = arith.constant 0.000000e+00 : f32
    %7 = vector.broadcast %cst_5 : f32 to vector<32x128xf32>
    %8 = arith.maximumf %6, %7 : vector<32x128xf32>
    %9 = arith.truncf %8 : vector<32x128xf32> to vector<32x128xbf16>
    %c0_6 = arith.constant 0 : index
    %c0_7 = arith.constant 0 : index
    %10 = vector.load %arg3[%c0_6, %c0_7] : memref<128x128xbf16, #tpu.memory_space<vmem>>, vector<128x128xbf16>
    %cst_8 = arith.constant dense<0.000000e+00> : vector<32x128xf32>
    %11 = tpu.matmul %9, %10, %cst_8 {dimension_numbers = #tpu.dot_dimension_numbers<[1], [0], [0], [1], [0, 0, 1, 1], [], []>} : vector<32x128xbf16>, vector<128x128xbf16>, vector<32x128xf32> -> vector<32x128xf32>
    %c1 = arith.constant 1 : index
    %c0_9 = arith.constant 0 : index
    %12 = vector.load %arg4[%c1, %c0_9] : memref<2x128xf32, #tpu.memory_space<vmem>>, vector<1x128xf32>
    %13 = vector.broadcast %12 : vector<1x128xf32> to vector<32x128xf32>
    %14 = arith.addf %11, %13 : vector<32x128xf32>
    %cst_10 = arith.constant 0.000000e+00 : f32
    %15 = vector.broadcast %cst_10 : f32 to vector<32x128xf32>
    %16 = arith.maximumf %14, %15 : vector<32x128xf32>
    %c0_11 = arith.constant 0 : index
    %c0_12 = arith.constant 0 : index
    %17 = vector.load %arg1[%c0_11, %c0_12] : memref<32x128xf32, #tpu.memory_space<vmem>>, vector<32x128xf32>
    %18 = arith.addf %17, %16 : vector<32x128xf32>
    %c0_13 = arith.constant 0 : index
    %c0_14 = arith.constant 0 : index
    %19 = vector.load %arg5[%c0_13, %c0_14] : memref<32x128xf32, #tpu.memory_space<vmem>>, vector<32x128xf32>
    tpu.vector_store %arg5[%c0_13, %c0_14], %18 {strides = array<i32>} : memref<32x128xf32, #tpu.memory_space<vmem>>, vector<32x128xf32>,
    return
  }
  func.func @transform_0(%arg0: i32) -> (i32, i32) {
    %c0_i32 = arith.constant 0 : i32
    %c0_i32_0 = arith.constant 0 : i32
    return %arg0, %c0_i32 : i32, i32
  }
  func.func @transform_1(%arg0: i32) -> (i32, i32) {
    %c0_i32 = arith.constant 0 : i32
    %c0_i32_0 = arith.constant 0 : i32
    %c0_i32_1 = arith.constant 0 : i32
    return %c0_i32, %c0_i32_0 : i32, i32
  }
  func.func @transform_2(%arg0: i32) -> (i32, i32) {
    %c0_i32 = arith.constant 0 : i32
    %c0_i32_0 = arith.constant 0 : i32
    %c0_i32_1 = arith.constant 0 : i32
    return %c0_i32, %c0_i32_0 : i32, i32
  }
  func.func @transform_3(%arg0: i32) -> (i32, i32) {
    %c0_i32 = arith.constant 0 : i32
    %c0_i32_0 = arith.constant 0 : i32
    %c0_i32_1 = arith.constant 0 : i32
    return %c0_i32, %c0_i32_0 : i32, i32
  }
  func.func @transform_4(%arg0: i32) -> (i32, i32) {
    %c0_i32 = arith.constant 0 : i32
    %c0_i32_0 = arith.constant 0 : i32
    return %arg0, %c0_i32 : i32, i32
  }
}

</mosaic_0001>

<llo_original>
// kernel: tpu_custom_call.1
$region0: #{tpu_custom_call.1}
  #allocation0 [shape = 'u32[]', space=smem, size = 0x4, offset = 0x4, fixed_abs, tag = 'smem constant byte address 0x4 - core index']
  #allocation1 [shape = 'u32[144,128]{1,0:T(1,128)}', space=vmem, size = 0x12000, scoped, tag = 'internal scratch']
  %s0 = inlined_call_operand.hbm [shape: f32[32,128], index: 0, kind: input, shape index: {}]
  %s1 = inlined_call_operand.hbm [shape: bf16[128,128], index: 1, kind: input, shape index: {}]
  %s2 = inlined_call_operand.hbm [shape: bf16[128,128], index: 2, kind: input, shape index: {}]
  %s3 = inlined_call_operand.vmem [shape: f32[2,128], index: 3, kind: input, shape index: {}]
  %s4 = inlined_call_operand.hbm [shape: f32[32,128], index: 4, kind: output, shape index: {}]
  %s5 = sld [smem:[#allocation0]]
  $region38: #{tpu_custom_call.1} parent=0
    _
  %s7 = ssub.s32 1, %s5
  %s8 = scalar_select 0, %s7, %s5
  $region1: #{tpu_custom_call.1} parent=0
    #allocation2 [shape = 'u8[16384]{0}', space=vmem, size = 0x4000, scoped, tag = 'input window, operand 0, single buffered']
    #allocation3 [shape = 's32[1]{0}', space=sflag, size = 0x4, scoped, tag = 'scoped memory for tpu_custom_call.1']
    #allocation4 [shape = 's32[1]{0}', space=sflag, size = 0x4, scoped, tag = 'scoped memory for tpu_custom_call.1']
    #allocation5 [shape = 'u8[32768]{0}', space=vmem, size = 0x8000, scoped, tag = 'input window, operand 1, single buffered']
    #allocation6 [shape = 's32[1]{0}', space=sflag, size = 0x4, scoped, tag = 'scoped memory for tpu_custom_call.1']
    #allocation7 [shape = 'u8[32768]{0}', space=vmem, size = 0x8000, scoped, tag = 'input window, operand 2, single buffered']
    #allocation8 [shape = 'u8[16384]{0}', space=vmem, size = 0x4000, scoped, tag = 'output window, operand 0, single buffered']
    %9 = vsyncpa [#allocation3], 0
    %10 = vsyncpa [#allocation6], 0
    %11 = vsyncpa [#allocation4], 0
    // Predicated region
    $region2: #{tpu_custom_call.1} parent=1 // pred_check
      _
    $region3: #{tpu_custom_call.1} parent=1 // pred_check_branch
      %13 = sbr.rel (0) target = $region5
    $region4: #{tpu_custom_call.1} parent=1 // pred_region
      %s15 = ssub.s32 512, 512
      %16 = vsyncadd [#allocation3], %s15
      %s17 = sshll.u32 [#allocation2], 4
      %s18 = int_to_ptr.vmem [resolvable:$true] %s17
      %23 = dma.hbm_to_vmem [thread:$0]  %s0, 512, %s18, [#allocation3], 128, 128, 8
    $region5: #{tpu_custom_call.1} parent=1 // pred_fallthru
      _
    // Predicated region
    $region6: #{tpu_custom_call.1} parent=1 // pred_check
      _
    $region7: #{tpu_custom_call.1} parent=1 // pred_check_branch
      %25 = sbr.rel (0) target = $region9
    $region8: #{tpu_custom_call.1} parent=1 // pred_region
      %s27 = ssub.s32 1024, 1024
      %28 = vsyncadd [#allocation6], %s27
      %s29 = sshll.u32 [#allocation5], 4
      %s30 = int_to_ptr.vmem [resolvable:$true] %s29
      %35 = dma.hbm_to_vmem [thread:$0]  %s1, 1024, %s30, [#allocation6], 64, 64, 4
    $region9: #{tpu_custom_call.1} parent=1 // pred_fallthru
      _
    // Predicated region
    $region10: #{tpu_custom_call.1} parent=1 // pred_check
      _
    $region11: #{tpu_custom_call.1} parent=1 // pred_check_branch
      %37 = sbr.rel (0) target = $region13
    $region12: #{tpu_custom_call.1} parent=1 // pred_region
      %s39 = ssub.s32 1024, 1024
      %40 = vsyncadd [#allocation6], %s39
      %s41 = sshll.u32 [#allocation7], 4
      %s42 = int_to_ptr.vmem [resolvable:$true] %s41
      %47 = dma.hbm_to_vmem [thread:$0]  %s2, 1024, %s42, [#allocation6], 64, 64, 4
    $region13: #{tpu_custom_call.1} parent=1 // pred_fallthru
      _
    // Predicated region
    $region14: #{tpu_custom_call.1} parent=1 // pred_check
      _
    $region15: #{tpu_custom_call.1} parent=1 // pred_check_branch
      %49 = sbr.rel (0) target = $region17
    $region16: #{tpu_custom_call.1} parent=1 // pred_region
      _
    $region17: #{tpu_custom_call.1} parent=1 // pred_fallthru
      _
    // Predicated region
    $region18: #{tpu_custom_call.1} parent=1 // pred_check
      _
    $region19: #{tpu_custom_call.1} parent=1 // pred_check_branch
      %51 = sbr.rel (0) target = $region21
    $region20: #{tpu_custom_call.1} parent=1 // pred_region
      %52 = dma.done [#allocation3], 512
    $region21: #{tpu_custom_call.1} parent=1 // pred_fallthru
      _
    // Predicated region
    $region22: #{tpu_custom_call.1} parent=1 // pred_check
      _
    $region23: #{tpu_custom_call.1} parent=1 // pred_check_branch
      %54 = sbr.rel (0) target = $region25
    $region24: #{tpu_custom_call.1} parent=1 // pred_region
      %55 = dma.done [#allocation6], 1024
    $region25: #{tpu_custom_call.1} parent=1 // pred_fallthru
      _
    // Predicated region
    $region26: #{tpu_custom_call.1} parent=1 // pred_check
      _
    $region27: #{tpu_custom_call.1} parent=1 // pred_check_branch
      %57 = sbr.rel (0) target = $region29
    $region28: #{tpu_custom_call.1} parent=1 // pred_region
      %58 = dma.done [#allocation6], 1024
    $region29: #{tpu_custom_call.1} parent=1 // pred_fallthru
      _
    %v60 = vld [vmem:[#allocation2] sm:$0xff]
    %v61 = vld [vmem:[#allocation2 + $0x8] sm:$0xff]
    %v62 = vld [vmem:[#allocation2 + $0x10] sm:$0xff]
    %v63 = vld [vmem:[#allocation2 + $0x18] sm:$0xff]
    %v64 = vpack.c.bf16 %v61, %v60
    %v65 = vpack.c.bf16 %v63, %v62
    %v66 = vld [vmem:[#allocation5] sm:$0xf]
    %v67 = vld [vmem:[#allocation5 + $0x4] sm:$0xf]
    %v68 = vld [vmem:[#allocation5 + $0x8] sm:$0xf]
    %v69 = vld [vmem:[#allocation5 + $0xc] sm:$0xf]
    %v70 = vld [vmem:[#allocation5 + $0x10] sm:$0xf]
    %v71 = vld [vmem:[#allocation5 + $0x14] sm:$0xf]
    %v72 = vld [vmem:[#allocation5 + $0x18] sm:$0xf]
    %v73 = vld [vmem:[#allocation5 + $0x1c] sm:$0xf]
    %v74 = vld [vmem:[#allocation5 + $0x20] sm:$0xf]
    %v75 = vld [vmem:[#allocation5 + $0x24] sm:$0xf]
    %v76 = vld [vmem:[#allocation5 + $0x28] sm:$0xf]
    %v77 = vld [vmem:[#allocation5 + $0x2c] sm:$0xf]
    %v78 = vld [vmem:[#allocation5 + $0x30] sm:$0xf]
    %v79 = vld [vmem:[#allocation5 + $0x34] sm:$0xf]
    %v80 = vld [vmem:[#allocation5 + $0x38] sm:$0xf]
    %v81 = vld [vmem:[#allocation5 + $0x3c] sm:$0xf]
    %v82 = vld [vmem:[%s3] sm:$0x1]
    %v83 = vlaneseq
    %v84 = vshrl.u32 %v83, 7
    %v85 = vsub.s32 0, %v84
    %v86 = vrot.slane %v82, %v85
    %v103 = vunpack.c.l.b16 %v66
    %v104 = vunpack.c.l.b16 %v67
    %v105 = vunpack.c.l.b16 %v68
    %v106 = vunpack.c.l.b16 %v69
    %v107 = vunpack.c.l.b16 %v70
    %v108 = vunpack.c.l.b16 %v71
    %v109 = vunpack.c.l.b16 %v72
    %v110 = vunpack.c.l.b16 %v73
    %v111 = vunpack.c.l.b16 %v74
    %v112 = vunpack.c.l.b16 %v75
    %v113 = vunpack.c.l.b16 %v76
    %v114 = vunpack.c.l.b16 %v77
    %v115 = vunpack.c.l.b16 %v78
    %v116 = vunpack.c.l.b16 %v79
    %v117 = vunpack.c.l.b16 %v80
    %v118 = vunpack.c.l.b16 %v81
    %v119 = vpack.c.b16 %v104, %v103
    %v120 = vpack.c.b16 %v106, %v105
    %v121 = vpack.c.b16 %v108, %v107
    %v122 = vpack.c.b16 %v110, %v109
    %v123 = vpack.c.b16 %v112, %v111
    %v124 = vpack.c.b16 %v114, %v113
    %v125 = vpack.c.b16 %v116, %v115
    %v126 = vpack.c.b16 %v118, %v117
    %135 = vmatprep.subr.bf16.mxu0 0
    %136 = vmatpush1.bf16.msra.mxu0 %v119
    %137 = vmatprep.subr.bf16.mxu0 0
    %138 = vmatpush1.bf16.msra.mxu0 %v120
    %139 = vmatprep.subr.bf16.mxu0 0
    %140 = vmatpush1.bf16.msra.mxu0 %v121
    %141 = vmatprep.subr.bf16.mxu0 0
    %142 = vmatpush1.bf16.msra.mxu0 %v122
    %143 = vmatprep.subr.bf16.mxu0 0
    %144 = vmatpush1.bf16.msra.mxu0 %v123
    %145 = vmatprep.subr.bf16.mxu0 0
    %146 = vmatpush1.bf16.msra.mxu0 %v124
    %147 = vmatprep.subr.bf16.mxu0 0
    %148 = vmatpush1.bf16.msra.mxu0 %v125
    %149 = vmatprep.subr.bf16.mxu0 0
    %150 = vmatpush1.bf16.msra.mxu0 %v126
    %151 = vmatprep.subr.bf16.mxu0 0
    %152 = vmatpush1.bf16.msra.mxu0 0
    %153 = vmatprep.subr.bf16.mxu0 0
    %154 = vmatpush1.bf16.msra.mxu0 0
    %155 = vmatprep.subr.bf16.mxu0 0
    %156 = vmatpush1.bf16.msra.mxu0 0
    %157 = vmatprep.subr.bf16.mxu0 0
    %158 = vmatpush1.bf16.msra.mxu0 0
    %159 = vmatprep.subr.bf16.mxu0 0
    %160 = vmatpush1.bf16.msra.mxu0 0
    %161 = vmatprep.subr.bf16.mxu0 0
    %162 = vmatpush1.bf16.msra.mxu0 0
    %163 = vmatprep.subr.bf16.mxu0 0
    %164 = vmatpush1.bf16.msra.mxu0 0
    %165 = vmatprep.subr.bf16.mxu0 0
    %166 = vmatpush1.bf16.msra.mxu0 0
    %167 = vmatprep.mubr.bf16.mxu0 0
    %168 = vmatmul.mubr.bf16.gmra.mrb[0].mxu0 %v64
    %v169 = vpop.f32.mrb[0].mxu0
    %v170 = vadd.f32 %v86, %v169
    %v171 = vpop.f32.mrb[0].mxu0
    %v172 = vpop.f32.mrb[0].mxu0
    %v173 = vadd.f32 %v86, %v172
    %v174 = vpop.f32.mrb[0].mxu0
    %175 = vmatprep.mubr.bf16.mxu0 0
    %176 = vmatmul.mubr.bf16.gmra.mrb[0].mxu0 %v65
    %v177 = vpop.f32.mrb[0].mxu0
    %v178 = vadd.f32 %v86, %v177
    %v179 = vpop.f32.mrb[0].mxu0
    %v180 = vpop.f32.mrb[0].mxu0
    %v181 = vadd.f32 %v86, %v180
    %v182 = vpop.f32.mrb[0].mxu0
    %183 = vdwg.mxu0
    %v184 = vmax.f32 %v170, 0.0
    %v185 = vmax.f32 %v173, 0.0
    %v186 = vmax.f32 %v178, 0.0
    %v187 = vmax.f32 %v181, 0.0
    %v188 = vpack.c.bf16 %v185, %v184
    %v189 = vpack.c.bf16 %v187, %v186
    %v190 = vld [vmem:[#allocation7] sm:$0xf]
    %v191 = vld [vmem:[#allocation7 + $0x4] sm:$0xf]
    %v192 = vld [vmem:[#allocation7 + $0x8] sm:$0xf]
    %v193 = vld [vmem:[#allocation7 + $0xc] sm:$0xf]
    %v194 = vld [vmem:[#allocation7 + $0x10] sm:$0xf]
    %v195 = vld [vmem:[#allocation7 + $0x14] sm:$0xf]
    %v196 = vld [vmem:[#allocation7 + $0x18] sm:$0xf]
    %v197 = vld [vmem:[#allocation7 + $0x1c] sm:$0xf]
    %v198 = vld [vmem:[#allocation7 + $0x20] sm:$0xf]
    %v199 = vld [vmem:[#allocation7 + $0x24] sm:$0xf]
    %v200 = vld [vmem:[#allocation7 + $0x28] sm:$0xf]
    %v201 = vld [vmem:[#allocation7 + $0x2c] sm:$0xf]
    %v202 = vld [vmem:[#allocation7 + $0x30] sm:$0xf]
    %v203 = vld [vmem:[#allocation7 + $0x34] sm:$0xf]
    %v204 = vld [vmem:[#allocation7 + $0x38] sm:$0xf]
    %v205 = vld [vmem:[#allocation7 + $0x3c] sm:$0xf]
    %v206 = vld [vmem:[%s3 + $0x1] sm:$0x1]
    %v207 = vlaneseq
    %v208 = vshrl.u32 %v207, 7
    %v209 = vsub.s32 0, %v208
    %v210 = vrot.slane %v206, %v209
    %v227 = vunpack.c.l.b16 %v190
    %v228 = vunpack.c.l.b16 %v191
    %v229 = vunpack.c.l.b16 %v192
    %v230 = vunpack.c.l.b16 %v193
    %v231 = vunpack.c.l.b16 %v194
    %v232 = vunpack.c.l.b16 %v195
    %v233 = vunpack.c.l.b16 %v196
    %v234 = vunpack.c.l.b16 %v197
    %v235 = vunpack.c.l.b16 %v198
    %v236 = vunpack.c.l.b16 %v199
    %v237 = vunpack.c.l.b16 %v200
    %v238 = vunpack.c.l.b16 %v201
    %v239 = vunpack.c.l.b16 %v202
    %v240 = vunpack.c.l.b16 %v203
    %v241 = vunpack.c.l.b16 %v204
    %v242 = vunpack.c.l.b16 %v205
    %v243 = vpack.c.b16 %v228, %v227
    %v244 = vpack.c.b16 %v230, %v229
    %v245 = vpack.c.b16 %v232, %v231
    %v246 = vpack.c.b16 %v234, %v233
    %v247 = vpack.c.b16 %v236, %v235
    %v248 = vpack.c.b16 %v238, %v237
    %v249 = vpack.c.b16 %v240, %v239
    %v250 = vpack.c.b16 %v242, %v241
    %259 = vmatprep.subr.bf16.mxu0 0
    %260 = vmatpush1.bf16.msra.mxu0 %v243
    %261 = vmatprep.subr.bf16.mxu0 0
    %262 = vmatpush1.bf16.msra.mxu0 %v244
    %263 = vmatprep.subr.bf16.mxu0 0
    %264 = vmatpush1.bf16.msra.mxu0 %v245
    %265 = vmatprep.subr.bf16.mxu0 0
    %266 = vmatpush1.bf16.msra.mxu0 %v246
    %267 = vmatprep.subr.bf16.mxu0 0
    %268 = vmatpush1.bf16.msra.mxu0 %v247
    %269 = vmatprep.subr.bf16.mxu0 0
    %270 = vmatpush1.bf16.msra.mxu0 %v248
    %271 = vmatprep.subr.bf16.mxu0 0
    %272 = vmatpush1.bf16.msra.mxu0 %v249
    %273 = vmatprep.subr.bf16.mxu0 0
    %274 = vmatpush1.bf16.msra.mxu0 %v250
    %275 = vmatprep.subr.bf16.mxu0 0
    %276 = vmatpush1.bf16.msra.mxu0 0
    %277 = vmatprep.subr.bf16.mxu0 0
    %278 = vmatpush1.bf16.msra.mxu0 0
    %279 = vmatprep.subr.bf16.mxu0 0
    %280 = vmatpush1.bf16.msra.mxu0 0
    %281 = vmatprep.subr.bf16.mxu0 0
    %282 = vmatpush1.bf16.msra.mxu0 0
    %283 = vmatprep.subr.bf16.mxu0 0
    %284 = vmatpush1.bf16.msra.mxu0 0
    %285 = vmatprep.subr.bf16.mxu0 0
    %286 = vmatpush1.bf16.msra.mxu0 0
    %287 = vmatprep.subr.bf16.mxu0 0
    %288 = vmatpush1.bf16.msra.mxu0 0
    %289 = vmatprep.subr.bf16.mxu0 0
    %290 = vmatpush1.bf16.msra.mxu0 0
    %291 = vmatprep.mubr.bf16.mxu0 0
    %292 = vmatmul.mubr.bf16.gmra.mrb[0].mxu0 %v188
    %v293 = vpop.f32.mrb[0].mxu0
    %v294 = vadd.f32 %v210, %v293
    %v295 = vpop.f32.mrb[0].mxu0
    %v296 = vpop.f32.mrb[0].mxu0
    %v297 = vadd.f32 %v210, %v296
    %v298 = vpop.f32.mrb[0].mxu0
    %299 = vmatprep.mubr.bf16.mxu0 0
    %300 = vmatmul.mubr.bf16.gmra.mrb[0].mxu0 %v189
    %v301 = vpop.f32.mrb[0].mxu0
    %v302 = vadd.f32 %v210, %v301
    %v303 = vpop.f32.mrb[0].mxu0
    %v304 = vpop.f32.mrb[0].mxu0
    %v305 = vadd.f32 %v210, %v304
    %v306 = vpop.f32.mrb[0].mxu0
    %307 = vdwg.mxu0
    %v308 = vmax.f32 %v294, 0.0
    %v309 = vmax.f32 %v297, 0.0
    %v310 = vmax.f32 %v302, 0.0
    %v311 = vmax.f32 %v305, 0.0
    %v312 = vadd.f32 %v60, %v308
    %v313 = vadd.f32 %v61, %v309
    %v314 = vadd.f32 %v62, %v310
    %v315 = vadd.f32 %v63, %v311
    %316 = vst [vmem:[#allocation8] sm:$0xff] %v312
    %317 = vst [vmem:[#allocation8 + $0x8] sm:$0xff] %v313
    %318 = vst [vmem:[#allocation8 + $0x10] sm:$0xff] %v314
    %319 = vst [vmem:[#allocation8 + $0x18] sm:$0xff] %v315
    // Predicated region
    $region30: #{tpu_custom_call.1} parent=1 // pred_check
      _
    $region31: #{tpu_custom_call.1} parent=1 // pred_check_branch
      %321 = sbr.rel (0) target = $region33
    $region32: #{tpu_custom_call.1} parent=1 // pred_region
      %s323 = ssub.s32 512, 512
      %324 = vsyncadd [#allocation4], %s323
      %s325 = sshll.u32 [#allocation8], 4
      %s326 = int_to_ptr.vmem [resolvable:$true] %s325
      %331 = dma.vmem_to_hbm [thread:$0]  %s326, 512, %s4, [#allocation4], 128, 128, 8
    $region33: #{tpu_custom_call.1} parent=1 // pred_fallthru
      _
    // Predicated region
    $region34: #{tpu_custom_call.1} parent=1 // pred_check
      _
    $region35: #{tpu_custom_call.1} parent=1 // pred_check_branch
      %333 = sbr.rel (0) target = $region37
    $region36: #{tpu_custom_call.1} parent=1 // pred_region
      %334 = dma.done [#allocation4], 512
    $region37: #{tpu_custom_call.1} parent=1 // pred_fallthru
      _
    %335 = vsyncpa [#allocation3], 1
    %336 = vsyncpa [#allocation6], 1
    %337 = vsyncpa [#allocation4], 1

// kernel: tpu_custom_call.1
$region0: #{tpu_custom_call.1}
  #allocation0 [shape = 'u32[]', space=smem, size = 0x4, offset = 0x4, fixed_abs, tag = 'smem constant byte address 0x4 - core index']
  #allocation1 [shape = 'u32[144,128]{1,0:T(1,128)}', space=vmem, size = 0x12000, scoped, tag = 'internal scratch']
  %s0 = inlined_call_operand.hbm [shape: f32[32,128], index: 0, kind: input, shape index: {}]
  %s1 = inlined_call_operand.hbm [shape: bf16[128,128], index: 1, kind: input, shape index: {}]
  %s2 = inlined_call_operand.hbm [shape: bf16[128,128], index: 2, kind: input, shape index: {}]
  %s3 = inlined_call_operand.vmem [shape: f32[2,128], index: 3, kind: input, shape index: {}]
  %s4 = inlined_call_operand.hbm [shape: f32[32,128], index: 4, kind: output, shape index: {}]
  %s5 = sld [smem:[#allocation0]]
  $region38: #{tpu_custom_call.1} parent=0
    _
  %s7 = ssub.s32 1, %s5
  %s8 = scalar_select 0, %s7, %s5
  $region1: #{tpu_custom_call.1} parent=0
    #allocation2 [shape = 'u8[16384]{0}', space=vmem, size = 0x4000, scoped, tag = 'input window, operand 0, single buffered']
    #allocation3 [shape = 's32[1]{0}', space=sflag, size = 0x4, scoped, tag = 'scoped memory for tpu_custom_call.1']
    #allocation4 [shape = 's32[1]{0}', space=sflag, size = 0x4, scoped, tag = 'scoped memory for tpu_custom_call.1']
    #allocation5 [shape = 'u8[32768]{0}', space=vmem, size = 0x8000, scoped, tag = 'input window, operand 1, single buffered']
    #allocation6 [shape = 's32[1]{0}', space=sflag, size = 0x4, scoped, tag = 'scoped memory for tpu_custom_call.1']
    #allocation7 [shape = 'u8[32768]{0}', space=vmem, size = 0x8000, scoped, tag = 'input window, operand 2, single buffered']
    #allocation8 [shape = 'u8[16384]{0}', space=vmem, size = 0x4000, scoped, tag = 'output window, operand 0, single buffered']
    %9 = vsyncpa [#allocation3], 0
    %10 = vsyncpa [#allocation6], 0
    %11 = vsyncpa [#allocation4], 0
    // Predicated region
    $region2: #{tpu_custom_call.1} parent=1 // pred_check
      _
    $region3: #{tpu_custom_call.1} parent=1 // pred_check_branch
      %13 = sbr.rel (0) target = $region5
    $region4: #{tpu_custom_call.1} parent=1 // pred_region
      %s15 = ssub.s32 512, 512
      %16 = vsyncadd [#allocation3], %s15
      %s17 = sshll.u32 [#allocation2], 4
      %s18 = int_to_ptr.vmem [resolvable:$true] %s17
      %23 = dma.hbm_to_vmem [thread:$0]  %s0, 512, %s18, [#allocation3], 128, 128, 8
    $region5: #{tpu_custom_call.1} parent=1 // pred_fallthru
      _
    // Predicated region
    $region6: #{tpu_custom_call.1} parent=1 // pred_check
      _
    $region7: #{tpu_custom_call.1} parent=1 // pred_check_branch
      %25 = sbr.rel (0) target = $region9
    $region8: #{tpu_custom_call.1} parent=1 // pred_region
      %s27 = ssub.s32 1024, 1024
      %28 = vsyncadd [#allocation6], %s27
      %s29 = sshll.u32 [#allocation5], 4
      %s30 = int_to_ptr.vmem [resolvable:$true] %s29
      %35 = dma.hbm_to_vmem [thread:$0]  %s1, 1024, %s30, [#allocation6], 64, 64, 4
    $region9: #{tpu_custom_call.1} parent=1 // pred_fallthru
      _
    // Predicated region
    $region10: #{tpu_custom_call.1} parent=1 // pred_check
      _
    $region11: #{tpu_custom_call.1} parent=1 // pred_check_branch
      %37 = sbr.rel (0) target = $region13
    $region12: #{tpu_custom_call.1} parent=1 // pred_region
      %s39 = ssub.s32 1024, 1024
      %40 = vsyncadd [#allocation6], %s39
      %s41 = sshll.u32 [#allocation7], 4
      %s42 = int_to_ptr.vmem [resolvable:$true] %s41
      %47 = dma.hbm_to_vmem [thread:$0]  %s2, 1024, %s42, [#allocation6], 64, 64, 4
    $region13: #{tpu_custom_call.1} parent=1 // pred_fallthru
      _
    // Predicated region
    $region14: #{tpu_custom_call.1} parent=1 // pred_check
      _
    $region15: #{tpu_custom_call.1} parent=1 // pred_check_branch
      %49 = sbr.rel (0) target = $region17
    $region16: #{tpu_custom_call.1} parent=1 // pred_region
      _
    $region17: #{tpu_custom_call.1} parent=1 // pred_fallthru
      _
    // Predicated region
    $region18: #{tpu_custom_call.1} parent=1 // pred_check
      _
    $region19: #{tpu_custom_call.1} parent=1 // pred_check_branch
      %51 = sbr.rel (0) target = $region21
    $region20: #{tpu_custom_call.1} parent=1 // pred_region
      %52 = dma.done [#allocation3], 512
    $region21: #{tpu_custom_call.1} parent=1 // pred_fallthru
      _
    // Predicated region
    $region22: #{tpu_custom_call.1} parent=1 // pred_check
      _
    $region23: #{tpu_custom_call.1} parent=1 // pred_check_branch
      %54 = sbr.rel (0) target = $region25
    $region24: #{tpu_custom_call.1} parent=1 // pred_region
      %55 = dma.done [#allocation6], 1024
    $region25: #{tpu_custom_call.1} parent=1 // pred_fallthru
      _
    // Predicated region
    $region26: #{tpu_custom_call.1} parent=1 // pred_check
      _
    $region27: #{tpu_custom_call.1} parent=1 // pred_check_branch
      %57 = sbr.rel (0) target = $region29
    $region28: #{tpu_custom_call.1} parent=1 // pred_region
      %58 = dma.done [#allocation6], 1024
    $region29: #{tpu_custom_call.1} parent=1 // pred_fallthru
      _
    %v60 = vld [vmem:[#allocation2] sm:$0xff]
    %v61 = vld [vmem:[#allocation2 + $0x8] sm:$0xff]
    %v62 = vld [vmem:[#allocation2 + $0x10] sm:$0xff]
    %v63 = vld [vmem:[#allocation2 + $0x18] sm:$0xff]
    %v64 = vpack.c.bf16 %v61, %v60
    %v65 = vpack.c.bf16 %v63, %v62
    %v66 = vld [vmem:[#allocation5] sm:$0xf]
    %v67 = vld [vmem:[#allocation5 + $0x4] sm:$0xf]
    %v68 = vld [vmem:[#allocation5 + $0x8] sm:$0xf]
    %v69 = vld [vmem:[#allocation5 + $0xc] sm:$0xf]
    %v70 = vld [vmem:[#allocation5 + $0x10] sm:$0xf]
    %v71 = vld [vmem:[#allocation5 + $0x14] sm:$0xf]
    %v72 = vld [vmem:[#allocation5 + $0x18] sm:$0xf]
    %v73 = vld [vmem:[#allocation5 + $0x1c] sm:$0xf]
    %v74 = vld [vmem:[#allocation5 + $0x20] sm:$0xf]
    %v75 = vld [vmem:[#allocation5 + $0x24] sm:$0xf]
    %v76 = vld [vmem:[#allocation5 + $0x28] sm:$0xf]
    %v77 = vld [vmem:[#allocation5 + $0x2c] sm:$0xf]
    %v78 = vld [vmem:[#allocation5 + $0x30] sm:$0xf]
    %v79 = vld [vmem:[#allocation5 + $0x34] sm:$0xf]
    %v80 = vld [vmem:[#allocation5 + $0x38] sm:$0xf]
    %v81 = vld [vmem:[#allocation5 + $0x3c] sm:$0xf]
    %v82 = vld [vmem:[%s3] sm:$0x1]
    %v83 = vlaneseq
    %v84 = vshrl.u32 %v83, 7
    %v85 = vsub.s32 0, %v84
    %v86 = vrot.slane %v82, %v85
    %v103 = vunpack.c.l.b16 %v66
    %v104 = vunpack.c.l.b16 %v67
    %v105 = vunpack.c.l.b16 %v68
    %v106 = vunpack.c.l.b16 %v69
    %v107 = vunpack.c.l.b16 %v70
    %v108 = vunpack.c.l.b16 %v71
    %v109 = vunpack.c.l.b16 %v72
    %v110 = vunpack.c.l.b16 %v73
    %v111 = vunpack.c.l.b16 %v74
    %v112 = vunpack.c.l.b16 %v75
    %v113 = vunpack.c.l.b16 %v76
    %v114 = vunpack.c.l.b16 %v77
    %v115 = vunpack.c.l.b16 %v78
    %v116 = vunpack.c.l.b16 %v79
    %v117 = vunpack.c.l.b16 %v80
    %v118 = vunpack.c.l.b16 %v81
    %v119 = vpack.c.b16 %v104, %v103
    %v120 = vpack.c.b16 %v106, %v105
    %v121 = vpack.c.b16 %v108, %v107
    %v122 = vpack.c.b16 %v110, %v109
    %v123 = vpack.c.b16 %v112, %v111
    %v124 = vpack.c.b16 %v114, %v113
    %v125 = vpack.c.b16 %v116, %v115
    %v126 = vpack.c.b16 %v118, %v117
    %135 = vmatprep.subr.bf16.mxu0 0
    %136 = vmatpush1.bf16.msra.mxu0 %v119
    %137 = vmatprep.subr.bf16.mxu0 0
    %138 = vmatpush1.bf16.msra.mxu0 %v120
    %139 = vmatprep.subr.bf16.mxu0 0
    %140 = vmatpush1.bf16.msra.mxu0 %v121
    %141 = vmatprep.subr.bf16.mxu0 0
    %142 = vmatpush1.bf16.msra.mxu0 %v122
    %143 = vmatprep.subr.bf16.mxu0 0
    %144 = vmatpush1.bf16.msra.mxu0 %v123
    %145 = vmatprep.subr.bf16.mxu0 0
    %146 = vmatpush1.bf16.msra.mxu0 %v124
    %147 = vmatprep.subr.bf16.mxu0 0
    %148 = vmatpush1.bf16.msra.mxu0 %v125
    %149 = vmatprep.subr.bf16.mxu0 0
    %150 = vmatpush1.bf16.msra.mxu0 %v126
    %151 = vmatprep.subr.bf16.mxu0 0
    %152 = vmatpush1.bf16.msra.mxu0 0
    %153 = vmatprep.subr.bf16.mxu0 0
    %154 = vmatpush1.bf16.msra.mxu0 0
    %155 = vmatprep.subr.bf16.mxu0 0
    %156 = vmatpush1.bf16.msra.mxu0 0
    %157 = vmatprep.subr.bf16.mxu0 0
    %158 = vmatpush1.bf16.msra.mxu0 0
    %159 = vmatprep.subr.bf16.mxu0 0
    %160 = vmatpush1.bf16.msra.mxu0 0
    %161 = vmatprep.subr.bf16.mxu0 0
    %162 = vmatpush1.bf16.msra.mxu0 0
    %163 = vmatprep.subr.bf16.mxu0 0
    %164 = vmatpush1.bf16.msra.mxu0 0
    %165 = vmatprep.subr.bf16.mxu0 0
    %166 = vmatpush1.bf16.msra.mxu0 0
    %167 = vmatprep.mubr.bf16.mxu0 0
    %168 = vmatmul.mubr.bf16.gmra.mrb[0].mxu0 %v64
    %v169 = vpop.f32.mrb[0].mxu0
    %v170 = vadd.f32 %v86, %v169
    %v171 = vpop.f32.mrb[0].mxu0
    %v172 = vpop.f32.mrb[0].mxu0
    %v173 = vadd.f32 %v86, %v172
    %v174 = vpop.f32.mrb[0].mxu0
    %175 = vmatprep.mubr.bf16.mxu0 0
    %176 = vmatmul.mubr.bf16.gmra.mrb[0].mxu0 %v65
    %v177 = vpop.f32.mrb[0].mxu0
    %v178 = vadd.f32 %v86, %v177
    %v179 = vpop.f32.mrb[0].mxu0
    %v180 = vpop.f32.mrb[0].mxu0
    %v181 = vadd.f32 %v86, %v180
    %v182 = vpop.f32.mrb[0].mxu0
    %183 = vdwg.mxu0
    %v184 = vmax.f32 %v170, 0.0
    %v185 = vmax.f32 %v173, 0.0
    %v186 = vmax.f32 %v178, 0.0
    %v187 = vmax.f32 %v181, 0.0
    %v188 = vpack.c.bf16 %v185, %v184
    %v189 = vpack.c.bf16 %v187, %v186
    %v190 = vld [vmem:[#allocation7] sm:$0xf]
    %v191 = vld [vmem:[#allocation7 + $0x4] sm:$0xf]
    %v192 = vld [vmem:[#allocation7 + $0x8] sm:$0xf]
    %v193 = vld [vmem:[#allocation7 + $0xc] sm:$0xf]
    %v194 = vld [vmem:[#allocation7 + $0x10] sm:$0xf]
    %v195 = vld [vmem:[#allocation7 + $0x14] sm:$0xf]
    %v196 = vld [vmem:[#allocation7 + $0x18] sm:$0xf]
    %v197 = vld [vmem:[#allocation7 + $0x1c] sm:$0xf]
    %v198 = vld [vmem:[#allocation7 + $0x20] sm:$0xf]
    %v199 = vld [vmem:[#allocation7 + $0x24] sm:$0xf]
    %v200 = vld [vmem:[#allocation7 + $0x28] sm:$0xf]
    %v201 = vld [vmem:[#allocation7 + $0x2c] sm:$0xf]
    %v202 = vld [vmem:[#allocation7 + $0x30] sm:$0xf]
    %v203 = vld [vmem:[#allocation7 + $0x34] sm:$0xf]
    %v204 = vld [vmem:[#allocation7 + $0x38] sm:$0xf]
    %v205 = vld [vmem:[#allocation7 + $0x3c] sm:$0xf]
    %v206 = vld [vmem:[%s3 + $0x1] sm:$0x1]
    %v207 = vlaneseq
    %v208 = vshrl.u32 %v207, 7
    %v209 = vsub.s32 0, %v208
    %v210 = vrot.slane %v206, %v209
    %v227 = vunpack.c.l.b16 %v190
    %v228 = vunpack.c.l.b16 %v191
    %v229 = vunpack.c.l.b16 %v192
    %v230 = vunpack.c.l.b16 %v193
    %v231 = vunpack.c.l.b16 %v194
    %v232 = vunpack.c.l.b16 %v195
    %v233 = vunpack.c.l.b16 %v196
    %v234 = vunpack.c.l.b16 %v197
    %v235 = vunpack.c.l.b16 %v198
    %v236 = vunpack.c.l.b16 %v199
    %v237 = vunpack.c.l.b16 %v200
    %v238 = vunpack.c.l.b16 %v201
    %v239 = vunpack.c.l.b16 %v202
    %v240 = vunpack.c.l.b16 %v203
    %v241 = vunpack.c.l.b16 %v204
    %v242 = vunpack.c.l.b16 %v205
    %v243 = vpack.c.b16 %v228, %v227
    %v244 = vpack.c.b16 %v230, %v229
    %v245 = vpack.c.b16 %v232, %v231
    %v246 = vpack.c.b16 %v234, %v233
    %v247 = vpack.c.b16 %v236, %v235
    %v248 = vpack.c.b16 %v238, %v237
    %v249 = vpack.c.b16 %v240, %v239
    %v250 = vpack.c.b16 %v242, %v241
    %259 = vmatprep.subr.bf16.mxu0 0
    %260 = vmatpush1.bf16.msra.mxu0 %v243
    %261 = vmatprep.subr.bf16.mxu0 0
    %262 = vmatpush1.bf16.msra.mxu0 %v244
    %263 = vmatprep.subr.bf16.mxu0 0
    %264 = vmatpush1.bf16.msra.mxu0 %v245
    %265 = vmatprep.subr.bf16.mxu0 0
    %266 = vmatpush1.bf16.msra.mxu0 %v246
    %267 = vmatprep.subr.bf16.mxu0 0
    %268 = vmatpush1.bf16.msra.mxu0 %v247
    %269 = vmatprep.subr.bf16.mxu0 0
    %270 = vmatpush1.bf16.msra.mxu0 %v248
    %271 = vmatprep.subr.bf16.mxu0 0
    %272 = vmatpush1.bf16.msra.mxu0 %v249
    %273 = vmatprep.subr.bf16.mxu0 0
    %274 = vmatpush1.bf16.msra.mxu0 %v250
    %275 = vmatprep.subr.bf16.mxu0 0
    %276 = vmatpush1.bf16.msra.mxu0 0
    %277 = vmatprep.subr.bf16.mxu0 0
    %278 = vmatpush1.bf16.msra.mxu0 0
    %279 = vmatprep.subr.bf16.mxu0 0
    %280 = vmatpush1.bf16.msra.mxu0 0
    %281 = vmatprep.subr.bf16.mxu0 0
    %282 = vmatpush1.bf16.msra.mxu0 0
    %283 = vmatprep.subr.bf16.mxu0 0
    %284 = vmatpush1.bf16.msra.mxu0 0
    %285 = vmatprep.subr.bf16.mxu0 0
    %286 = vmatpush1.bf16.msra.mxu0 0
    %287 = vmatprep.subr.bf16.mxu0 0
    %288 = vmatpush1.bf16.msra.mxu0 0
    %289 = vmatprep.subr.bf16.mxu0 0
    %290 = vmatpush1.bf16.msra.mxu0 0
    %291 = vmatprep.mubr.bf16.mxu0 0
    %292 = vmatmul.mubr.bf16.gmra.mrb[0].mxu0 %v188
    %v293 = vpop.f32.mrb[0].mxu0
    %v294 = vadd.f32 %v210, %v293
    %v295 = vpop.f32.mrb[0].mxu0
    %v296 = vpop.f32.mrb[0].mxu0
    %v297 = vadd.f32 %v210, %v296
    %v298 = vpop.f32.mrb[0].mxu0
    %299 = vmatprep.mubr.bf16.mxu0 0
    %300 = vmatmul.mubr.bf16.gmra.mrb[0].mxu0 %v189
    %v301 = vpop.f32.mrb[0].mxu0
    %v302 = vadd.f32 %v210, %v301
    %v303 = vpop.f32.mrb[0].mxu0
    %v304 = vpop.f32.mrb[0].mxu0
    %v305 = vadd.f32 %v210, %v304
    %v306 = vpop.f32.mrb[0].mxu0
    %307 = vdwg.mxu0
    %v308 = vmax.f32 %v294, 0.0
    %v309 = vmax.f32 %v297, 0.0
    %v310 = vmax.f32 %v302, 0.0
    %v311 = vmax.f32 %v305, 0.0
    %v312 = vadd.f32 %v60, %v308
    %v313 = vadd.f32 %v61, %v309
    %v314 = vadd.f32 %v62, %v310
    %v315 = vadd.f32 %v63, %v311
    %316 = vst [vmem:[#allocation8] sm:$0xff] %v312
    %317 = vst [vmem:[#allocation8 + $0x8] sm:$0xff] %v313
    %318 = vst [vmem:[#allocation8 + $0x10] sm:$0xff] %v314
    %319 = vst [vmem:[#allocation8 + $0x18] sm:$0xff] %v315
    // Predicated region
    $region30: #{tpu_custom_call.1} parent=1 // pred_check
      _
    $region31: #{tpu_custom_call.1} parent=1 // pred_check_branch
      %321 = sbr.rel (0) target = $region33
    $region32: #{tpu_custom_call.1} parent=1 // pred_region
      %s323 = ssub.s32 512, 512
      %324 = vsyncadd [#allocation4], %s323
      %s325 = sshll.u32 [#allocation8], 4
      %s326 = int_to_ptr.vmem [resolvable:$true] %s325
      %331 = dma.vmem_to_hbm [thread:$0]  %s326, 512, %s4, [#allocation4], 128, 128, 8
    $region33: #{tpu_custom_call.1} parent=1 // pred_fallthru
      _
    // Predicated region
    $region34: #{tpu_custom_call.1} parent=1 // pred_check
      _
    $region35: #{tpu_custom_call.1} parent=1 // pred_check_branch
      %333 = sbr.rel (0) target = $region37
    $region36: #{tpu_custom_call.1} parent=1 // pred_region
      %334 = dma.done [#allocation4], 512
    $region37: #{tpu_custom_call.1} parent=1 // pred_fallthru
      _
    %335 = vsyncpa [#allocation3], 1
    %336 = vsyncpa [#allocation6], 1
    %337 = vsyncpa [#allocation4], 1

</llo_original>
